<compile_context>
chip_gen: v5e
topology: v5e:2x2
jax: 0.10.0
libtpu: 0.0.40
codegen_flags: <defaults>
</compile_context>

<pallas_src>
import functools
from typing import Any, NamedTuple

import jax
import jax.numpy as jnp
from jax.experimental import pallas as pl
from jax.experimental.pallas import tpu as pltpu


def _round_up(x, m):
    return ((x + m - 1) // m) * m


def _largest_tile(total, cap, quantum=128):
    """Largest multiple of `quantum` that divides `total` and is <= cap."""
    best = quantum
    t = quantum
    while t <= min(cap, total):
        if total % t == 0:
            best = t
        t += quantum
    return best


class EncoderParams(NamedTuple):
    w_t: jax.Array        # (Kp, Np)  transposed, padded, compute-dtype weight
    b: jax.Array          # (1,  Np)  padded float32 bias
    in_features: int
    out_features: int
    tn: int
    tk: int
    compute_dtype: Any    # None => keep x's dtype (e.g. float32)


def prepare_encoder_params(weight, bias, *, compute_dtype=jnp.bfloat16,
                           max_tn=512, max_tk=2048):
    """One-time parameter setup: transpose / pad / cast the Linear weights.

    weight: (out_features, in_features)  -- PyTorch nn.Linear layout
    bias:   (out_features,)
    """
    N, K = weight.shape

    # Lane-dense N tile (multiple of 128, single tile when it fits).
    tn = min(max_tn, _round_up(N, 128))
    Np = _round_up(N, tn)

    # Full-extent K tile when it fits (no x K-padding per forward); otherwise
    # the largest 128-multiple divisor of the padded K.
    if K <= max_tk:
        tk, Kp = K, K
    else:
        Kp = _round_up(K, 128)
        tk = _largest_tile(Kp, max_tk, 128)

    w_t = jnp.pad(weight.T, ((0, Kp - K), (0, Np - N)))        # (Kp, Np)
    if compute_dtype is not None:
        w_t = w_t.astype(compute_dtype)
    b = jnp.pad(bias.astype(jnp.float32), (0, Np - N)).reshape(1, Np)

    return EncoderParams(w_t, b, K, N, tn, tk, compute_dtype)


def _encoder_kernel(x_ref, w_ref, b_ref, o_ref, acc_ref, *, negative_slope):
    """One (tm, tn) output tile; grid axis 2 walks the K reduction.

    x_ref:   (tm, tk)        activations (compute dtype, e.g. bf16)
    w_ref:   (tk, tn)        weight already in (in, out) layout -- lane-dense RHS
    b_ref:   (1, tn) f32     bias
    o_ref:   (tm, tn)        output tile
    acc_ref: (tm, tn) f32    VMEM accumulator, persistent across the K axis
    """
    @pl.when(pl.program_id(2) == 0)
    def _():
        acc_ref[...] = jnp.zeros_like(acc_ref)

    acc_ref[...] += jnp.dot(x_ref[...], w_ref[...],
                            preferred_element_type=jnp.float32)

    @pl.when(pl.program_id(2) == pl.num_programs(2) - 1)
    def _():
        h = acc_ref[...] + b_ref[...]
        if 0.0 <= negative_slope <= 1.0:
            # leaky_relu(h, s) == max(h, s*h) for 0 <= s <= 1 (pure VPU).
            y = jnp.maximum(h, negative_slope * h)
        else:
            y = jnp.where(h >= 0, h, negative_slope * h)
        o_ref[...] = y.astype(o_ref.dtype)


def encoder_forward(x, params: EncoderParams, *, negative_slope=0.01,
                    max_tm=512):
    """leaky_relu(x @ weight.T + bias), i.e. PyTorch nn.Linear + F.leaky_relu.

    x: (..., in_features); params from prepare_encoder_params().
    """
    orig_shape = x.shape
    K = orig_shape[-1]
    assert K == params.in_features, (K, params.in_features)
    N = params.out_features
    out_dtype = x.dtype

    x2d = x.reshape(-1, K)
    M = x2d.shape[0]
    Kp, Np = params.w_t.shape
    tk, tn = params.tk, params.tn

    if params.compute_dtype is not None:
        x2d = x2d.astype(params.compute_dtype)

    tm = min(max_tm, _round_up(M, 8))
    Mp = _round_up(M, tm)

    # v7x megacore: make sure the "parallel" part of the grid has >= 2 blocks
    # so both TensorCores get work (harmless on single-TC v5e/v6e).
    if (Mp // tm) * (Np // tn) == 1:
        if Np >= 256 and Np % 256 == 0:
            tn = Np // 2
        elif tm >= 16:
            tm = _round_up(tm // 2, 8)
            Mp = _round_up(M, tm)

    # Per-forward padding: only the trailing rows of M (and K only when K was
    # not full-extent-tileable at setup, i.e. K > max_tk and K % 128 != 0).
    pad_m, pad_k = Mp - M, Kp - K
    if pad_m or pad_k:
        x2d = jnp.pad(x2d, ((0, pad_m), (0, pad_k)))

    grid = (Mp // tm, Np // tn, Kp // tk)

    in_isz = jnp.dtype(x2d.dtype).itemsize
    w_isz = jnp.dtype(params.w_t.dtype).itemsize
    out_isz = jnp.dtype(out_dtype).itemsize

    # Truthful streaming estimate: W is re-read per M block, x per N block.
    cost = pl.CostEstimate(
        flops=2 * Mp * Np * Kp,
        transcendentals=0,
        bytes_accessed=int(Mp * Kp * in_isz * (Np // tn)
                           + Kp * Np * w_isz * (Mp // tm)
                           + Np * 4 * (Mp // tm)
                           + Mp * Np * out_isz),
    )

    # Double-buffered VMEM footprint (+ f32 accumulator) with headroom.
    vmem_bytes = (2 * (tm * tk * in_isz + tk * tn * w_isz
                       + tn * 4 + tm * tn * out_isz)
                  + tm * tn * 4)
    vmem_limit = int(min(max(2 * vmem_bytes, 32 << 20), 48 << 20))

    out_padded = pl.pallas_call(
        functools.partial(_encoder_kernel, negative_slope=negative_slope),
        out_shape=jax.ShapeDtypeStruct((Mp, Np), out_dtype),
        grid_spec=pltpu.PrefetchScalarGridSpec(
            num_scalar_prefetch=0,
            grid=grid,
            in_specs=[
                pl.BlockSpec((tm, tk), lambda i, j, k: (i, k)),   # x
                pl.BlockSpec((tk, tn), lambda i, j, k: (k, j)),   # weight (K, N)
                pl.BlockSpec((1, tn), lambda i, j, k: (0, j)),    # bias
            ],
            out_specs=pl.BlockSpec((tm, tn), lambda i, j, k: (i, j)),
            scratch_shapes=[pltpu.VMEM((tm, tn), jnp.float32)],
        ),
        compiler_params=pltpu.CompilerParams(
            dimension_semantics=("parallel", "parallel", "arbitrary"),
            vmem_limit_bytes=vmem_limit),
        cost_estimate=cost,
    )(x2d, params.w_t, params.b)

    out = out_padded[:M, :N]
    return out.reshape(*orig_shape[:-1], N)


def _reference(x, weight, bias, negative_slope=0.01, compute_dtype=None):
    """Pure-JAX reference with the same input quantization as the kernel."""
    xc = x.astype(compute_dtype) if compute_dtype is not None else x
    wc = weight.astype(compute_dtype) if compute_dtype is not None else weight
    h = jax.lax.dot_general(
        xc, wc,
        dimension_numbers=(((xc.ndim - 1,), (1,)), ((), ())),
        preferred_element_type=jnp.float32) + bias.astype(jnp.float32)
    return jnp.where(h >= 0, h, negative_slope * h).astype(x.dtype)


if __name__ == "__main__":
    key = jax.random.PRNGKey(0)

    # --- Test 1: small shapes implied by the module (leading dims + bf16). ---
    batch, seq, in_features, out_features = 2, 8, 32, 16
    kx, kw, kb, key = jax.random.split(key, 4)
    bound = 1.0 / (in_features ** 0.5)
    x = jax.random.normal(kx, (batch, seq, in_features), dtype=jnp.float32)
    weight = jax.random.uniform(kw, (out_features, in_features),
                                minval=-bound, maxval=bound, dtype=jnp.float32)
    bias = jax.random.uniform(kb, (out_features,),
                              minval=-bound, maxval=bound, dtype=jnp.float32)

    params = prepare_encoder_params(weight, bias)          # bf16 compute path
    out = jax.block_until_ready(encoder_forward(x, params))
    ref = _reference(x, weight, bias, compute_dtype=jnp.bfloat16)
    assert out.shape == (batch, seq, out_features)
    assert jnp.allclose(out, ref, atol=1e-3, rtol=1e-3), \
        float(jnp.max(jnp.abs(out - ref)))

    # Loose sanity check against the full-f32 PyTorch-equivalent math.
    ref_f32 = _reference(x, weight, bias)
    assert jnp.allclose(out, ref_f32, atol=3e-2, rtol=3e-2), \
        float(jnp.max(jnp.abs(out - ref_f32)))

    # --- Test 2: exercise the tiled (M, N, K) grid + accumulator reduction ---
    # (max_tk=512 forces two K steps while keeping the test shapes small).
    batch2, in2, out2 = 200, 1024, 320
    kx, kw, kb, key = jax.random.split(key, 4)
    bound2 = 1.0 / (in2 ** 0.5)
    x2 = jax.random.normal(kx, (batch2, in2), dtype=jnp.float32)
    w2 = jax.random.uniform(kw, (out2, in2), minval=-bound2, maxval=bound2,
                            dtype=jnp.float32)
    b2 = jax.random.uniform(kb, (out2,), minval=-bound2, maxval=bound2,
                            dtype=jnp.float32)

    params2 = prepare_encoder_params(w2, b2, max_tk=512)
    out2_k = jax.block_until_ready(encoder_forward(x2, params2))
    ref2 = _reference(x2, w2, b2, compute_dtype=jnp.bfloat16)
    assert out2_k.shape == (batch2, out2)
    assert jnp.allclose(out2_k, ref2, atol=2e-2, rtol=2e-2), \
        float(jnp.max(jnp.abs(out2_k - ref2)))

    # --- Test 3: f32 compute path (compute_dtype=None) stays exact. ---
    params3 = prepare_encoder_params(w2, b2, compute_dtype=None, max_tk=512)
    out3 = jax.block_until_ready(encoder_forward(x2, params3))
    ref3 = _reference(x2, w2, b2)
    assert jnp.allclose(out3, ref3, atol=1e-3, rtol=1e-3), \
        float(jnp.max(jnp.abs(out3 - ref3)))

    print("KERNEL_OK")
</pallas_src>

<mosaic_0001>
module attributes {stable_mosaic.version = 11 : i64} {
  func.func @_encoder_kernel(%arg0: i32, %arg1: i32, %arg2: i32, %arg3: memref<8x32xbf16, #tpu.memory_space<vmem>>, %arg4: memref<32x128xbf16, #tpu.memory_space<vmem>>, %arg5: memref<1x128xf32, #tpu.memory_space<vmem>>, %arg6: memref<8x128xf32, #tpu.memory_space<vmem>>, %arg7: memref<8x128xf32, #tpu.memory_space<vmem>>) attributes {dimension_semantics = [#tpu.dimension_semantics<parallel>, #tpu.dimension_semantics<parallel>, #tpu.dimension_semantics<arbitrary>], iteration_bounds = array<i64: 2, 1, 1>, scalar_prefetch = 0 : i64, scratch_operands = 1 : i64, tpu.core_type = #tpu.core_type<tc>, window_params = [{transform_indices = @transform_0, window_bounds = array<i64: 8, 32>}, {transform_indices = @transform_1, window_bounds = array<i64: 32, 128>}, {transform_indices = @transform_2, window_bounds = array<i64: 1, 128>}, {transform_indices = @transform_3, window_bounds = array<i64: 8, 128>}]} {
    %c0_i32 = arith.constant 0 : i32
    %0 = arith.cmpi eq, %arg2, %c0_i32 : i32
    %1 = arith.extui %0 : i1 to i32
    %c0_i32_0 = arith.constant 0 : i32
    %2 = arith.cmpi ne, %1, %c0_i32_0 : i32
    scf.if %2 {
      %cst_10 = arith.constant 0.000000e+00 : f32
      %12 = vector.broadcast %cst_10 : f32 to vector<8x128xf32>
      %c0_11 = arith.constant 0 : index
      %c0_12 = arith.constant 0 : index
      %13 = vector.load %arg7[%c0_11, %c0_12] : memref<8x128xf32, #tpu.memory_space<vmem>>, vector<8x128xf32>
      tpu.vector_store %arg7[%c0_11, %c0_12], %12 {strides = array<i32>} : memref<8x128xf32, #tpu.memory_space<vmem>>, vector<8x128xf32>,
    } else {
    }
    %c0 = arith.constant 0 : index
    %c0_1 = arith.constant 0 : index
    %3 = vector.load %arg7[%c0, %c0_1] : memref<8x128xf32, #tpu.memory_space<vmem>>, vector<8x128xf32>
    %c0_2 = arith.constant 0 : index
    %c0_3 = arith.constant 0 : index
    %4 = vector.load %arg3[%c0_2, %c0_3] : memref<8x32xbf16, #tpu.memory_space<vmem>>, vector<8x32xbf16>
    %c0_4 = arith.constant 0 : index
    %c0_5 = arith.constant 0 : index
    %5 = vector.load %arg4[%c0_4, %c0_5] : memref<32x128xbf16, #tpu.memory_space<vmem>>, vector<32x128xbf16>
    %cst = arith.constant dense<0.000000e+00> : vector<8x128xf32>
    %6 = tpu.matmul %4, %5, %cst {dimension_numbers = #tpu.dot_dimension_numbers<[1], [0], [0], [1], [0, 0, 1, 1], [], []>} : vector<8x32xbf16>, vector<32x128xbf16>, vector<8x128xf32> -> vector<8x128xf32>
    %7 = arith.addf %3, %6 : vector<8x128xf32>
    %c0_6 = arith.constant 0 : index
    %c0_7 = arith.constant 0 : index
    %8 = vector.load %arg7[%c0_6, %c0_7] : memref<8x128xf32, #tpu.memory_space<vmem>>, vector<8x128xf32>
    tpu.vector_store %arg7[%c0_6, %c0_7], %7 {strides = array<i32>} : memref<8x128xf32, #tpu.memory_space<vmem>>, vector<8x128xf32>,
    %c0_i32_8 = arith.constant 0 : i32
    %9 = arith.cmpi eq, %arg2, %c0_i32_8 : i32
    %10 = arith.extui %9 : i1 to i32
    %c0_i32_9 = arith.constant 0 : i32
    %11 = arith.cmpi ne, %10, %c0_i32_9 : i32
    scf.if %11 {
      %c0_10 = arith.constant 0 : index
      %c0_11 = arith.constant 0 : index
      %12 = vector.load %arg7[%c0_10, %c0_11] : memref<8x128xf32, #tpu.memory_space<vmem>>, vector<8x128xf32>
      %c0_12 = arith.constant 0 : index
      %c0_13 = arith.constant 0 : index
      %13 = vector.load %arg5[%c0_12, %c0_13] : memref<1x128xf32, #tpu.memory_space<vmem>>, vector<1x128xf32>
      %14 = vector.broadcast %13 : vector<1x128xf32> to vector<8x128xf32>
      %15 = arith.addf %12, %14 : vector<8x128xf32>
      %cst_14 = arith.constant 0.00999999977 : f32
      %16 = vector.broadcast %cst_14 : f32 to vector<8x128xf32>
      %17 = arith.mulf %16, %15 : vector<8x128xf32>
      %18 = arith.maximumf %15, %17 : vector<8x128xf32>
      %c0_15 = arith.constant 0 : index
      %c0_16 = arith.constant 0 : index
      %19 = vector.load %arg6[%c0_15, %c0_16] : memref<8x128xf32, #tpu.memory_space<vmem>>, vector<8x128xf32>
      tpu.vector_store %arg6[%c0_15, %c0_16], %18 {strides = array<i32>} : memref<8x128xf32, #tpu.memory_space<vmem>>, vector<8x128xf32>,
    } else {
    }
    return
  }
  func.func @transform_0(%arg0: i32, %arg1: i32, %arg2: i32) -> (i32, i32) {
    %c0_i32 = arith.constant 0 : i32
    return %arg0, %arg2 : i32, i32
  }
  func.func @transform_1(%arg0: i32, %arg1: i32, %arg2: i32) -> (i32, i32) {
    %c0_i32 = arith.constant 0 : i32
    return %arg2, %arg1 : i32, i32
  }
  func.func @transform_2(%arg0: i32, %arg1: i32, %arg2: i32) -> (i32, i32) {
    %c0_i32 = arith.constant 0 : i32
    %c0_i32_0 = arith.constant 0 : i32
    return %c0_i32, %arg1 : i32, i32
  }
  func.func @transform_3(%arg0: i32, %arg1: i32, %arg2: i32) -> (i32, i32) {
    %c0_i32 = arith.constant 0 : i32
    return %arg0, %arg1 : i32, i32
  }
}

</mosaic_0001>

<llo_original>
// kernel: tpu_custom_call.1
$region0: #{tpu_custom_call.1}
  #allocation0 [shape = 'u32[]', space=smem, size = 0x4, offset = 0x4, fixed_abs, tag = 'smem constant byte address 0x4 - core index']
  #allocation1 [shape = 'u32[72,128]{1,0:T(1,128)}', space=vmem, size = 0x9000, scoped, tag = 'internal scratch']
  #allocation2 [shape = 'f32[8,128]{1,0:T(8,128)}', space=vmem, size = 0x1000, scoped, tag = 'scratch operand']
  %s0 = inlined_call_operand.hbm [shape: bf16[16,32], index: 0, kind: input, shape index: {}]
  %s1 = inlined_call_operand.hbm [shape: bf16[32,128], index: 1, kind: input, shape index: {}]
  %s2 = inlined_call_operand.vmem [shape: f32[1,128], index: 2, kind: input, shape index: {}]
  %s3 = inlined_call_operand.hbm [shape: f32[16,128], index: 3, kind: output, shape index: {}]
  %s4 = sld [smem:[#allocation0]]
  $region61: #{tpu_custom_call.1} parent=0
    _
  %s6 = ssub.s32 1, %s4
  %s7 = scalar_select 0, %s6, %s4
  $region1: #{tpu_custom_call.1} parent=0
    #allocation3 [shape = 'u8[4096]{0}', space=vmem, size = 0x1000, scoped, tag = 'input window, operand 0']
    #allocation4 [shape = 's32[2]{0}', space=sflag, size = 0x8, scoped, tag = 'scoped memory for tpu_custom_call.1']
    #allocation5 [shape = 's32[2]{0}', space=sflag, size = 0x8, scoped, tag = 'scoped memory for tpu_custom_call.1']
    #allocation6 [shape = 'u8[8192]{0}', space=vmem, size = 0x2000, scoped, tag = 'input window, operand 1, single buffered']
    #allocation7 [shape = 's32[1]{0}', space=sflag, size = 0x4, scoped, tag = 'scoped memory for tpu_custom_call.1']
    #allocation8 [shape = 'u8[8192]{0}', space=vmem, size = 0x2000, scoped, tag = 'output window, operand 0']
    %8 = vsyncpa [#allocation4], 0
    %s9 = scalar_lea.sflag [#allocation4], 1
    %10 = vsyncpa %s9, 0
    %11 = vsyncpa [#allocation7], 0
    %12 = vsyncpa [#allocation5], 0
    %s13 = scalar_lea.sflag [#allocation5], 1
    %14 = vsyncpa %s13, 0
    loop: start=0, step=1, limit=4
    $region2: #{tpu_custom_call.1} parent=1 // loop_pre_header
      _
    $region3: #{tpu_custom_call.1} parent=1 // loop_header
      %s16 = sphi 0, %s20
      %p17 = scmp.ge.s32.totalorder %s16, 4
      %s23 = sphi 0, %s42
      %s24 = sphi 0, %s38
      %s25 = sphi 0, %s34
      %s26 = sphi 0, %s23
      %s27 = sphi 0, %s24
      %s28 = sphi 0, %s25
      %s29 = sphi 0, %s26
      %s30 = sphi 0, %s27
      %s31 = sphi 0, %s28
      %s47 = sphi 0, %s49
      %s50 = sphi 0, %s47
      %s51 = sphi 0, %s50
      %s67 = sphi 0, %s51
      %s75 = sphi 0, %s77
      %s78 = sphi 0, %s75
      %s79 = sphi 0, %s78
      %s95 = sphi 0, %s79
      %s101 = sphi 0, %s103
      %s104 = sphi 0, %s101
      %s105 = sphi 0, %s104
      %s121 = sphi 0, %s105
      %s129 = sphi 0, %s131
      %s132 = sphi 0, %s129
      %s133 = sphi 0, %s132
      %s149 = sphi 0, %s133
    $region4: #{tpu_custom_call.1} parent=1 // loop_header_branch
      %19 = sbr.rel (%p17) target = $region8
    $region5: #{tpu_custom_call.1} parent=1 // loop_body
      %s21 = ssub.s32 %s16, 1
      %s22 = ssub.s32 %s16, 2
      %s32 = sadd.s32 1, %s25
      %p33 = scmp.ge.s32.totalorder %s32, 1
      %s34 = scalar_select %p33, 0, %s32
      %s35 = sadd.s32 1, %s24
      %s36 = scalar_select %p33, %s35, %s24
      %p37 = scmp.ge.s32.totalorder %s36, 1
      %s38 = scalar_select %p37, 0, %s36
      %s39 = sadd.s32 1, %s23
      %s40 = scalar_select %p37, %s39, %s23
      %p41 = scmp.ge.s32.totalorder %s40, 2
      %s42 = scalar_select %p41, 0, %s40
      %s43 = ssub.s32 %s23, %s42
      %s44 = ssub.s32 %s25, %s34
      %s45 = sor.u32 %s43, %s44
      %p46 = scmp.eq.s32.totalorder %s45, 0
      %s48 = sadd.s32 %s47, 1
      %s49 = scalar_select %p46, %s47, %s48
      %p52 = pneg %p46
      %p53 = scmp.eq.s32.totalorder %s16, 1
      %p54 = por %p52, %p53
      %p55 = scmp.ne.s32.totalorder %s47, %s50
      %p56 = scmp.eq.s32.totalorder %s16, 0
      %p57 = por %p55, %p56
      %p58 = scmp.ne.s32.totalorder %s47, %s50
      %p59 = scmp.eq.s32.totalorder %s21, 1
      %p60 = por %p58, %p59
      %p61 = scmp.ne.s32.totalorder %s50, %s51
      %p62 = scmp.eq.s32.totalorder %s21, 0
      %p63 = por %p61, %p62
      %p64 = scmp.ne.s32.totalorder %s50, %s51
      %p65 = scmp.eq.s32.totalorder %s22, 1
      %p66 = por %p64, %p65
      %p68 = scmp.ne.s32.totalorder %s51, %s67
      %p69 = scmp.eq.s32.totalorder %s22, 0
      %p70 = por %p68, %p69
      %s71 = ssub.s32 %s25, %s34
      %s72 = ssub.s32 %s24, %s38
      %s73 = sor.u32 %s71, %s72
      %p74 = scmp.eq.s32.totalorder %s73, 0
      %s76 = sadd.s32 %s75, 1
      %s77 = scalar_select %p74, %s75, %s76
      %p80 = pneg %p74
      %p81 = scmp.eq.s32.totalorder %s16, 1
      %p82 = por %p80, %p81
      %p83 = scmp.ne.s32.totalorder %s75, %s78
      %p84 = scmp.eq.s32.totalorder %s16, 0
      %p85 = por %p83, %p84
      %p86 = scmp.ne.s32.totalorder %s75, %s78
      %p87 = scmp.eq.s32.totalorder %s21, 1
      %p88 = por %p86, %p87
      %p89 = scmp.ne.s32.totalorder %s78, %s79
      %p90 = scmp.eq.s32.totalorder %s21, 0
      %p91 = por %p89, %p90
      %p92 = scmp.ne.s32.totalorder %s78, %s79
      %p93 = scmp.eq.s32.totalorder %s22, 1
      %p94 = por %p92, %p93
      %p96 = scmp.ne.s32.totalorder %s79, %s95
      %p97 = scmp.eq.s32.totalorder %s22, 0
      %p98 = por %p96, %p97
      %s99 = ssub.s32 %s24, %s38
      %p100 = scmp.eq.s32.totalorder %s99, 0
      %s102 = sadd.s32 %s101, 1
      %s103 = scalar_select %p100, %s101, %s102
      %p106 = pneg %p100
      %p107 = scmp.eq.s32.totalorder %s16, 1
      %p108 = por %p106, %p107
      %p109 = scmp.ne.s32.totalorder %s101, %s104
      %p110 = scmp.eq.s32.totalorder %s16, 0
      %p111 = por %p109, %p110
      %p112 = scmp.ne.s32.totalorder %s101, %s104
      %p113 = scmp.eq.s32.totalorder %s21, 1
      %p114 = por %p112, %p113
      %p115 = scmp.ne.s32.totalorder %s104, %s105
      %p116 = scmp.eq.s32.totalorder %s21, 0
      %p117 = por %p115, %p116
      %p118 = scmp.ne.s32.totalorder %s104, %s105
      %p119 = scmp.eq.s32.totalorder %s22, 1
      %p120 = por %p118, %p119
      %p122 = scmp.ne.s32.totalorder %s105, %s121
      %p123 = scmp.eq.s32.totalorder %s22, 0
      %p124 = por %p122, %p123
      %s125 = ssub.s32 %s23, %s42
      %s126 = ssub.s32 %s24, %s38
      %s127 = sor.u32 %s125, %s126
      %p128 = scmp.eq.s32.totalorder %s127, 0
      %s130 = sadd.s32 %s129, 1
      %s131 = scalar_select %p128, %s129, %s130
      %p134 = pneg %p128
      %p135 = scmp.eq.s32.totalorder %s16, 1
      %p136 = por %p134, %p135
      %p137 = scmp.ne.s32.totalorder %s129, %s132
      %p138 = scmp.eq.s32.totalorder %s16, 0
      %p139 = por %p137, %p138
      %p140 = scmp.ne.s32.totalorder %s129, %s132
      %p141 = scmp.eq.s32.totalorder %s21, 1
      %p142 = por %p140, %p141
      %p143 = scmp.ne.s32.totalorder %s132, %s133
      %p144 = scmp.eq.s32.totalorder %s21, 0
      %p145 = por %p143, %p144
      %p146 = scmp.ne.s32.totalorder %s132, %s133
      %p147 = scmp.eq.s32.totalorder %s22, 1
      %p148 = por %p146, %p147
      %p150 = scmp.ne.s32.totalorder %s133, %s149
      %p151 = scmp.eq.s32.totalorder %s22, 0
      %p152 = por %p150, %p151
      %p153 = scmp.le.s32.totalorder 1, %s16
      %p154 = scmp.lt.s32.totalorder %s16, 3
      %p155 = pnand %p153, %p154
      %p156 = pneg %p155
      // Predicated region
      $region9: #{tpu_custom_call.1} parent=5 // pred_check
        _
      $region10: #{tpu_custom_call.1} parent=5 // pred_check_branch
        %158 = sbr.rel (%p155) target = $region12
      $region11: #{tpu_custom_call.1} parent=5 // pred_region
        %s159 = ssub.s32 %s16, 1
        // Predicated region
        $region13: #{tpu_custom_call.1} parent=11 // pred_check
          %p160 = pneg %p91
        $region14: #{tpu_custom_call.1} parent=11 // pred_check_branch
          %162 = sbr.rel (%p160) target = $region16
        $region15: #{tpu_custom_call.1} parent=11 // pred_region
          %s163 = smul.u32 4, %s28
          %165 = vsyncadd [#allocation7], 0
          %s166 = sadd.s32 %s27, %s163
          %s167 = smul.addr %s166, 4
          %s168 = scalar_lea.hbm %s1, %s167
          %s169 = sshll.u32 %s168, 4
          %s170 = int_to_ptr.hbm [resolvable:$true] %s169
          %s171 = sshll.u32 [#allocation6], 4
          %s172 = int_to_ptr.vmem [resolvable:$true] %s171
          %177 = dma.hbm_to_vmem [thread:$0]  %s170, 256, %s172, [#allocation7], 64, 64, 4
        $region16: #{tpu_custom_call.1} parent=11 // pred_fallthru
          _
        // Predicated region
        $region17: #{tpu_custom_call.1} parent=11 // pred_check
          %p178 = pneg %p117
        $region18: #{tpu_custom_call.1} parent=11 // pred_check_branch
          %180 = sbr.rel (%p178) target = $region20
        $region19: #{tpu_custom_call.1} parent=11 // pred_region
          %p181 = scmp.lt.s32.totalorder %s27, 0
          %s182 = scalar_select %p181, %s27, 0
          %s183 = scalar_lea.vmem %s2, %s182
        $region20: #{tpu_custom_call.1} parent=11 // pred_fallthru
          _
      $region12: #{tpu_custom_call.1} parent=5 // pred_fallthru
        _
      %p184 = scmp.lt.s32.totalorder %s16, 2
      // Predicated region
      $region21: #{tpu_custom_call.1} parent=5 // pred_check
        %p185 = pneg %p184
      $region22: #{tpu_custom_call.1} parent=5 // pred_check_branch
        %187 = sbr.rel (%p185) target = $region24
      $region23: #{tpu_custom_call.1} parent=5 // pred_region
        // Predicated region
        $region25: #{tpu_custom_call.1} parent=23 // pred_check
          %p188 = pneg %p57
        $region26: #{tpu_custom_call.1} parent=23 // pred_check_branch
          %190 = sbr.rel (%p188) target = $region28
        $region27: #{tpu_custom_call.1} parent=23 // pred_region
          %s191 = sand.u32 %s47, 1
          %s192 = scalar_lea.sflag [#allocation4], %s191
          %s193 = sand.u32 %s47, 1
          %s194 = smul.addr %s193, 4
          %s195 = scalar_lea.vmem [#allocation3], %s194
          %197 = vsyncadd %s192, 0
          %s198 = sadd.s32 %s25, %s23
          %s199 = smul.addr %s198, 4
          %s200 = scalar_lea.hbm %s0, %s199
          %s202 = sshll.u32 %s200, 4
          %s203 = int_to_ptr.hbm [resolvable:$true] %s202
          %s204 = sshll.u32 %s195, 4
          %s205 = int_to_ptr.vmem [resolvable:$true] %s204
          %207 = dma.hbm_to_vmem [thread:$0]  %s203, 64, %s205, %s192
        $region28: #{tpu_custom_call.1} parent=23 // pred_fallthru
          _
      $region24: #{tpu_custom_call.1} parent=5 // pred_fallthru
        _
      %p208 = scmp.le.s32.totalorder 1, %s16
      %p209 = scmp.lt.s32.totalorder %s16, 3
      %p210 = pnand %p208, %p209
      %p211 = pneg %p210
      // Predicated region
      $region29: #{tpu_custom_call.1} parent=5 // pred_check
        _
      $region30: #{tpu_custom_call.1} parent=5 // pred_check_branch
        %213 = sbr.rel (%p210) target = $region32
      $region31: #{tpu_custom_call.1} parent=5 // pred_region
        %s214 = ssub.s32 %s16, 1
        %s215 = sand.u32 %s50, 1
        %s216 = scalar_lea.sflag [#allocation4], %s215
        %s217 = sand.u32 %s50, 1
        %s218 = smul.addr %s217, 4
        %s219 = scalar_lea.vmem [#allocation3], %s218
        // Predicated region
        $region33: #{tpu_custom_call.1} parent=31 // pred_check
          %p220 = pneg %p63
        $region34: #{tpu_custom_call.1} parent=31 // pred_check_branch
          %222 = sbr.rel (%p220) target = $region36
        $region35: #{tpu_custom_call.1} parent=31 // pred_region
          %224 = dma.done %s216, 64
        $region36: #{tpu_custom_call.1} parent=31 // pred_fallthru
          _
        // Predicated region
        $region37: #{tpu_custom_call.1} parent=31 // pred_check
          %p225 = pneg %p91
        $region38: #{tpu_custom_call.1} parent=31 // pred_check_branch
          %227 = sbr.rel (%p225) target = $region40
        $region39: #{tpu_custom_call.1} parent=31 // pred_region
          %229 = dma.done [#allocation7], 256
        $region40: #{tpu_custom_call.1} parent=31 // pred_fallthru
          _
        %s230 = sand.u32 %s50, 1
        %s231 = scalar_lea.sflag [#allocation4], %s230
        %s232 = sand.u32 %s50, 1
        %s233 = smul.addr %s232, 4
        %s234 = scalar_lea.vmem [#allocation3], %s233
        %p235 = pneg %p63
        %p236 = pneg %p60
        %p237 = pneg %p91
        %p238 = pneg %p88
        %p239 = scmp.lt.s32.totalorder %s27, 0
        %s240 = scalar_select %p239, %s27, 0
        %s241 = scalar_lea.vmem %s2, %s240
        %p242 = pneg %p117
        %p243 = pneg %p114
        %p244 = pneg %p145
        %p245 = pneg %p142
        %s246 = sand.u32 %s132, 1
        %s247 = scalar_lea.sflag [#allocation5], %s246
        %s248 = sand.u32 %s132, 1
        %s249 = smul.addr %s248, 8
        %s250 = scalar_lea.vmem [#allocation8], %s249
        %s251 = smul.u32 4, %s28
        %p252 = scmp.lt.s32.totalorder %s27, 0
        %s253 = scalar_select %p252, %s27, 0
        %s254 = scalar_lea.vmem %s2, %s253
        %p256 = scmp.eq.s32.totalorder %s28, 0
        // Predicated region
        $region41: #{tpu_custom_call.1} parent=31 // pred_check
          %p257 = pneg %p256
        $region42: #{tpu_custom_call.1} parent=31 // pred_check_branch
          %259 = sbr.rel (%p257) target = $region44
        $region43: #{tpu_custom_call.1} parent=31 // pred_region
          %260 = vst [vmem:[#allocation2] sm:$0xff] 0.0
        $region44: #{tpu_custom_call.1} parent=31 // pred_fallthru
          _
        %v261 = vld [vmem:[#allocation2] sm:$0xff]
        %v262 = vld [vmem:[%s219] sm:$0xf]
        %v263 = vld [vmem:[#allocation6] sm:$0xf]
        %v264 = vld [vmem:[#allocation6 + $0x4] sm:$0xf]
        %v265 = vld [vmem:[#allocation6 + $0x8] sm:$0xf]
        %v266 = vld [vmem:[#allocation6 + $0xc] sm:$0xf]
        %v271 = vunpack.c.l.b16 %v263
        %v272 = vunpack.c.l.b16 %v264
        %v273 = vunpack.c.l.b16 %v265
        %v274 = vunpack.c.l.b16 %v266
        %v275 = vpack.c.b16 %v272, %v271
        %v276 = vpack.c.b16 %v274, %v273
        %vm279 = vcmask 261120
        %v281 = vsel %vm279, %v262, 0
        %283 = vmatpush.bf16.msra.mxu0 0
        %284 = vmatpush.bf16.msra.mxu0 0
        %285 = vmatpush.bf16.msra.mxu0 0
        %286 = vmatpush.bf16.msra.mxu0 0
        %287 = vmatpush.bf16.msra.mxu0 0
        %288 = vmatpush.bf16.msra.mxu0 0
        %289 = vmatpush.bf16.msra.mxu0 %v276
        %290 = vmatpush.bf16.msra.mxu0 %v275
        %291 = vmatmul.bf16.gmra.mxu0 %v281
        %v292 = vpop.f32.mrf.mxu0
        %v293 = vadd.f32 0.0, %v292
        %v294 = vpop.f32.mrf.mxu0
        %295 = vdwg.mxu0
        %v296 = vadd.f32 %v261, %v293
        %297 = vst [vmem:[#allocation2] sm:$0xff] %v296
        // Predicated region
        $region45: #{tpu_custom_call.1} parent=31 // pred_check
          %p298 = pneg %p256
        $region46: #{tpu_custom_call.1} parent=31 // pred_check_branch
          %300 = sbr.rel (%p298) target = $region48
        $region47: #{tpu_custom_call.1} parent=31 // pred_region
          %v301 = vld [vmem:[#allocation2] sm:$0xff]
          %v302 = vld [vmem:[%s254] sm:$0x1]
          %v304 = vperm.slane %v302, 0
          %v306 = vadd.f32 %v301, %v304
          %v307 = vmul.f32 %v306, 0.01
          %v308 = vmax.f32 %v306, %v307
          %309 = vst [vmem:[%s250] sm:$0xff] %v308
        $region48: #{tpu_custom_call.1} parent=31 // pred_fallthru
          _
        %s310 = sand.u32 %s132, 1
        %s311 = scalar_lea.sflag [#allocation5], %s310
        %s312 = sand.u32 %s132, 1
        %s313 = smul.addr %s312, 8
        %s314 = scalar_lea.vmem [#allocation8], %s313
        // Predicated region
        $region49: #{tpu_custom_call.1} parent=31 // pred_check
          %p315 = pneg %p142
        $region50: #{tpu_custom_call.1} parent=31 // pred_check_branch
          %317 = sbr.rel (%p315) target = $region52
        $region51: #{tpu_custom_call.1} parent=31 // pred_region
          %319 = vsyncadd %s311, 0
          %s320 = sadd.s32 %s27, %s26
          %s321 = smul.addr %s320, 8
          %s322 = scalar_lea.hbm %s3, %s321
          %s324 = sshll.u32 %s314, 4
          %s325 = int_to_ptr.vmem [resolvable:$true] %s324
          %s326 = sshll.u32 %s322, 4
          %s327 = int_to_ptr.hbm [resolvable:$true] %s326
          %329 = dma.vmem_to_hbm [thread:$0]  %s325, 128, %s327, %s311
        $region52: #{tpu_custom_call.1} parent=31 // pred_fallthru
          _
      $region32: #{tpu_custom_call.1} parent=5 // pred_fallthru
        _
      %p330 = scmp.le.s32.totalorder 2, %s16
      // Predicated region
      $region53: #{tpu_custom_call.1} parent=5 // pred_check
        %p331 = pneg %p330
      $region54: #{tpu_custom_call.1} parent=5 // pred_check_branch
        %333 = sbr.rel (%p331) target = $region56
      $region55: #{tpu_custom_call.1} parent=5 // pred_region
        %s334 = ssub.s32 %s16, 2
        // Predicated region
        $region57: #{tpu_custom_call.1} parent=55 // pred_check
          %p335 = pneg %p148
        $region58: #{tpu_custom_call.1} parent=55 // pred_check_branch
          %337 = sbr.rel (%p335) target = $region60
        $region59: #{tpu_custom_call.1} parent=55 // pred_region
          %s338 = sand.u32 %s133, 1
          %s339 = scalar_lea.sflag [#allocation5], %s338
          %s340 = sand.u32 %s133, 1
          %s341 = smul.addr %s340, 8
          %s342 = scalar_lea.vmem [#allocation8], %s341
          %344 = dma.done %s339, 128
        $region60: #{tpu_custom_call.1} parent=55 // pred_fallthru
          _
      $region56: #{tpu_custom_call.1} parent=5 // pred_fallthru
        _
    $region6: #{tpu_custom_call.1} parent=1 // loop_footer
      %s20 = sadd.s32 1, %s16
    $region7: #{tpu_custom_call.1} parent=1 // loop_footer_branch
      %15 = sbr.rel target = $region3
    $region8: #{tpu_custom_call.1} parent=1 // loop_exit
      _
    %345 = vsyncpa [#allocation4], 1
    %s346 = scalar_lea.sflag [#allocation4], 1
    %347 = vsyncpa %s346, 1
    %348 = vsyncpa [#allocation7], 1
    %349 = vsyncpa [#allocation5], 1
    %s350 = scalar_lea.sflag [#allocation5], 1
    %351 = vsyncpa %s350, 1

</llo_original>
